<compile_context>
chip_gen: v6e
topology: v6e:2x2x1
jax: 0.10.0
libtpu: 0.0.40
codegen_flags: <defaults>
</compile_context>

<pallas_src>
import warnings

import jax
import jax.numpy as jnp
from jax import lax
from jax.experimental import pallas as pl
from jax.experimental.pallas import tpu as pltpu


def _affine_kernel(x_ref, scale_ref, shift_ref, o_ref):
    # Pure VPU elementwise on one (TILE_R, TILE_L) tile; (TILE_R, 1) params
    # broadcast along the lane axis.
    o_ref[...] = x_ref[...] * scale_ref[...] + shift_ref[...]


def _vmem_capacity_bytes():
    """Trace-time VMEM capacity (used only to pick tile/byte budgets)."""
    try:
        info = pltpu.get_tpu_info()
        for attr in ("vmem_capacity_bytes", "vmem_bytes", "vmem_size_bytes"):
            v = getattr(info, attr, None)
            if v:
                return int(v)
    except Exception:
        pass
    return 128 * 1024 * 1024  # v5e/v6e default


def _pick_tiles(R, L, dtype, block_budget_bytes):
    """Pick (tile_r, tile_l): tile_l a multiple of 128, tile_r a multiple of
    the dtype-aware sublane quantum; lane axis is filled first under the byte
    budget.  Ragged last blocks are left to pl.cdiv grids + Pallas masking —
    no full-dimension fallback, so the block never blows past VMEM."""
    itemsize = jnp.dtype(dtype).itemsize
    sub_q = max(8, 32 // max(1, itemsize))       # 8 f32, 16 bf16, 32 int8/fp8
    lane_full = pl.cdiv(L, 128) * 128
    row_full = pl.cdiv(R, sub_q) * sub_q

    # Lane axis first: widest 128-multiple that fits the budget at sub_q rows.
    max_l = max(128, (block_budget_bytes // (sub_q * itemsize)) // 128 * 128)
    tile_l = min(lane_full, max_l)
    # Remaining budget goes to rows (capped; >512 rows buys nothing extra).
    max_r = max(sub_q, (block_budget_bytes // (tile_l * itemsize)) // sub_q * sub_q)
    tile_r = min(row_full, max_r, 512)
    return tile_r, tile_l


def _apply_fn_pallas(x2, scale2, shift2):
    """fn(x) on x2 of shape (N*C, H*W); scale2/shift2 of shape (N*C, 1)."""
    R, L = x2.shape

    vmem_cap = _vmem_capacity_bytes()
    if vmem_cap <= 64 * 1024 * 1024:          # v7x: 64 MiB physical VMEM
        block_budget = 4 * 1024 * 1024
        vmem_limit = 32 * 1024 * 1024
    else:                                     # v5e / v6e: 128 MiB physical
        block_budget = 8 * 1024 * 1024
        vmem_limit = 64 * 1024 * 1024

    tile_r, tile_l = _pick_tiles(R, L, x2.dtype, block_budget)
    n_r = pl.cdiv(R, tile_r)
    n_l = pl.cdiv(L, tile_l)

    # Put the axis with more tiles first so the leading "parallel" grid axis
    # has >= 2 blocks and both v7x TensorCores get work (no-op on v5e/v6e).
    if n_r >= n_l:
        grid = (n_r, n_l)
        x_map = lambda i, j: (i, j)
        p_map = lambda i, j: (i, 0)
    else:
        grid = (n_l, n_r)
        x_map = lambda i, j: (j, i)
        p_map = lambda i, j: (j, 0)   # tiny (tile_r, 1) re-fetch: negligible

    return pl.pallas_call(
        _affine_kernel,
        out_shape=jax.ShapeDtypeStruct((R, L), x2.dtype),
        grid=grid,
        in_specs=[
            pl.BlockSpec((tile_r, tile_l), x_map),   # x tile
            pl.BlockSpec((tile_r, 1), p_map),        # per-row scale
            pl.BlockSpec((tile_r, 1), p_map),        # per-row shift
        ],
        out_specs=pl.BlockSpec((tile_r, tile_l), x_map),
        input_output_aliases={0: 0},                 # write fn(x) in place of x
        compiler_params=pltpu.CompilerParams(
            dimension_semantics=("parallel", "parallel"),
            vmem_limit_bytes=vmem_limit),
    )(x2, scale2, shift2)


def random_apply(x, scale, shift, p, key):
    """RandomApply forward.

    x: (N, C, H, W).  scale, shift: (C,).  p: Python float (static).
    key: JAX PRNG key used for the single Bernoulli decision.
    """
    N, C, H, W = x.shape
    x2 = x.reshape(N * C, H * W)
    # Tiny per-row (= per (n, c)) channel parameters: row r -> channel r % C.
    scale2 = jnp.tile(scale.reshape(C, 1), (N, 1)).astype(x.dtype)   # (N*C, 1)
    shift2 = jnp.tile(shift.reshape(C, 1), (N, 1)).astype(x.dtype)   # (N*C, 1)

    # Static p short-circuit (common aug configs use p = 0.0 or 1.0): skips the
    # uniform draw and the lax.cond entirely.
    if isinstance(p, (int, float)):
        if p <= 0.0:
            return x
        if p >= 1.0:
            return _apply_fn_pallas(x2, scale2, shift2).reshape(N, C, H, W)

    # Single uniform draw.  PyTorch returns identity iff random.random() > p,
    # i.e. fn is applied with probability p  ->  apply_fn = (u <= p).
    u = jax.random.uniform(key, (), dtype=jnp.float32)
    apply_fn = u <= jnp.float32(p)

    # Skip the streaming kernel entirely on the identity branch:
    # no HBM read/write of the full tensor when fn is not applied.
    out2 = lax.cond(
        apply_fn,
        lambda operands: _apply_fn_pallas(*operands),
        lambda operands: operands[0],
        (x2, scale2, shift2),
    )
    return out2.reshape(N, C, H, W)


if __name__ == "__main__":
    # Alias-through-cond / reshape can occasionally defeat donation; that only
    # costs a copy, never correctness — keep stderr clean.
    warnings.filterwarnings("ignore", message="Some donated buffers were not usable")

    key = jax.random.PRNGKey(0)
    kx, kdec = jax.random.split(key)

    N, C, H, W = 2, 4, 16, 16
    x = jax.random.normal(kx, (N, C, H, W), dtype=jnp.float32)

    # Deterministic "fn" parameters (synthetic, built in-script).
    scale = 1.0 + 0.1 * jnp.arange(C, dtype=jnp.float32)
    shift = 0.01 * jnp.arange(C, dtype=jnp.float32)
    fn_x = x * scale.reshape(1, C, 1, 1) + shift.reshape(1, C, 1, 1)

    # p static; x donated so the in-place alias in the pallas_call is usable.
    random_apply_jit = jax.jit(random_apply, static_argnums=(3,), donate_argnums=(0,))

    # p = 1.0 -> fn is always applied: exercises the Pallas kernel path.
    out_fn = jax.block_until_ready(random_apply_jit(jnp.copy(x), scale, shift, 1.0, kdec))
    assert bool(jnp.allclose(out_fn, fn_x, atol=1e-5, rtol=1e-5)), "fn path mismatch"

    # p = 0.0 -> identity (Python short-circuit, no kernel launch).
    out_id = jax.block_until_ready(random_apply_jit(jnp.copy(x), scale, shift, 0.0, kdec))
    assert bool(jnp.allclose(out_id, x)), "identity path mismatch"

    # p = 0.5 -> result must be exactly one of {x, fn(x)}.
    out = jax.block_until_ready(random_apply_jit(jnp.copy(x), scale, shift, 0.5, kdec))
    is_identity = bool(jnp.allclose(out, x, atol=1e-6))
    is_fn = bool(jnp.allclose(out, fn_x, atol=1e-5, rtol=1e-5))
    assert is_identity or is_fn, "output is neither x nor fn(x)"

    print("KERNEL_OK")
</pallas_src>

<mosaic_0001>
module attributes {stable_mosaic.version = 11 : i64} {
  func.func @_affine_kernel(%arg0: i32, %arg1: i32, %arg2: memref<8x256xf32, #tpu.memory_space<vmem>>, %arg3: memref<8x1xf32, #tpu.memory_space<vmem>>, %arg4: memref<8x1xf32, #tpu.memory_space<vmem>>, %arg5: memref<8x256xf32, #tpu.memory_space<vmem>>) attributes {dimension_semantics = [#tpu.dimension_semantics<parallel>, #tpu.dimension_semantics<parallel>], iteration_bounds = array<i64: 1, 1>, scalar_prefetch = 0 : i64, scratch_operands = 0 : i64, tpu.core_type = #tpu.core_type<tc>, window_params = [{transform_indices = @transform_0, window_bounds = array<i64: 8, 256>}, {transform_indices = @transform_1, window_bounds = array<i64: 8, 1>}, {transform_indices = @transform_2, window_bounds = array<i64: 8, 1>}, {transform_indices = @transform_3, window_bounds = array<i64: 8, 256>}]} {
    %c0 = arith.constant 0 : index
    %c0_0 = arith.constant 0 : index
    %0 = vector.load %arg2[%c0, %c0_0] : memref<8x256xf32, #tpu.memory_space<vmem>>, vector<8x256xf32>
    %c0_1 = arith.constant 0 : index
    %c0_2 = arith.constant 0 : index
    %1 = vector.load %arg3[%c0_1, %c0_2] : memref<8x1xf32, #tpu.memory_space<vmem>>, vector<8x1xf32>
    %2 = vector.broadcast %1 : vector<8x1xf32> to vector<8x256xf32>
    %3 = arith.mulf %0, %2 : vector<8x256xf32>
    %c0_3 = arith.constant 0 : index
    %c0_4 = arith.constant 0 : index
    %4 = vector.load %arg4[%c0_3, %c0_4] : memref<8x1xf32, #tpu.memory_space<vmem>>, vector<8x1xf32>
    %5 = vector.broadcast %4 : vector<8x1xf32> to vector<8x256xf32>
    %6 = arith.addf %3, %5 : vector<8x256xf32>
    %c0_5 = arith.constant 0 : index
    %c0_6 = arith.constant 0 : index
    %7 = vector.load %arg5[%c0_5, %c0_6] : memref<8x256xf32, #tpu.memory_space<vmem>>, vector<8x256xf32>
    tpu.vector_store %arg5[%c0_5, %c0_6], %6 {strides = array<i32>} : memref<8x256xf32, #tpu.memory_space<vmem>>, vector<8x256xf32>,
    return
  }
  func.func @transform_0(%arg0: i32, %arg1: i32) -> (i32, i32) {
    %c0_i32 = arith.constant 0 : i32
    return %arg0, %arg1 : i32, i32
  }
  func.func @transform_1(%arg0: i32, %arg1: i32) -> (i32, i32) {
    %c0_i32 = arith.constant 0 : i32
    %c0_i32_0 = arith.constant 0 : i32
    return %arg0, %c0_i32 : i32, i32
  }
  func.func @transform_2(%arg0: i32, %arg1: i32) -> (i32, i32) {
    %c0_i32 = arith.constant 0 : i32
    %c0_i32_0 = arith.constant 0 : i32
    return %arg0, %c0_i32 : i32, i32
  }
  func.func @transform_3(%arg0: i32, %arg1: i32) -> (i32, i32) {
    %c0_i32 = arith.constant 0 : i32
    return %arg0, %arg1 : i32, i32
  }
}

</mosaic_0001>

<llo_original>
// kernel: random_apply.1
$region0: #{random_apply.1}
  #allocation0 [shape = 'u32[]', space=smem, size = 0x4, offset = 0x4, fixed_abs, tag = 'smem constant byte address 0x4 - core index']
  #allocation1 [shape = 'u32[144,128]{1,0:T(1,128)}', space=vmem, size = 0x12000, scoped, tag = 'internal scratch']
  %s0 = inlined_call_operand.vmem [shape: f32[8,256], index: 0, kind: input, shape index: {}, may-alias: {0,3}]
  %s1 = inlined_call_operand.vmem [shape: f32[8,1], index: 1, kind: input, shape index: {}]
  %s2 = inlined_call_operand.vmem [shape: f32[8,1], index: 2, kind: input, shape index: {}]
  %s3 = inlined_call_operand.vmem [shape: f32[8,256], index: 3, kind: output, shape index: {}, may-alias: {0,3}]
  %s4 = sld [smem:[#allocation0]]
  $region22: #{random_apply.1} parent=0
    _
  %s6 = ssub.s32 1, %s4
  %s7 = scalar_select 0, %s6, %s4
  // Predicated region
  $region2: #{random_apply.1} parent=0 // pred_check
    _
  $region3: #{random_apply.1} parent=0 // pred_check_branch
    %9 = sbr.rel (0) target = $region5
  $region4: #{random_apply.1} parent=0 // pred_region
    _
  $region5: #{random_apply.1} parent=0 // pred_fallthru
    _
  // Predicated region
  $region6: #{random_apply.1} parent=0 // pred_check
    _
  $region7: #{random_apply.1} parent=0 // pred_check_branch
    %11 = sbr.rel (0) target = $region9
  $region8: #{random_apply.1} parent=0 // pred_region
    _
  $region9: #{random_apply.1} parent=0 // pred_fallthru
    _
  // Predicated region
  $region10: #{random_apply.1} parent=0 // pred_check
    _
  $region11: #{random_apply.1} parent=0 // pred_check_branch
    %13 = sbr.rel (0) target = $region13
  $region12: #{random_apply.1} parent=0 // pred_region
    _
  $region13: #{random_apply.1} parent=0 // pred_fallthru
    _
  %v14 = vld [vmem:[%s0] sm:$0xff]
  %v15 = vld [vmem:[%s0 + $0x8] sm:$0xff]
  %v16 = vld [vmem:[%s1] sm:$0xff]
  %18 = vset.pattern.permute.xlu0 0
  %19 = vperm.xlu0 %18, %v16
  %v20 = vpop.permute.xlu0 %19
  %v22 = vmul.f32 %v14, %v20
  %v23 = vmul.f32 %v15, %v20
  %v24 = vld [vmem:[%s2] sm:$0xff]
  %26 = vset.pattern.permute.xlu0 0
  %27 = vperm.xlu0 %26, %v24
  %v28 = vpop.permute.xlu0 %27
  %v30 = vadd.f32 %v22, %v28
  %v31 = vadd.f32 %v23, %v28
  %32 = vst [vmem:[%s3] sm:$0xff] %v30
  %33 = vst [vmem:[%s3 + $0x8] sm:$0xff] %v31
  // Predicated region
  $region14: #{random_apply.1} parent=0 // pred_check
    _
  $region15: #{random_apply.1} parent=0 // pred_check_branch
    %35 = sbr.rel (0) target = $region17
  $region16: #{random_apply.1} parent=0 // pred_region
    _
  $region17: #{random_apply.1} parent=0 // pred_fallthru
    _
  // Predicated region
  $region18: #{random_apply.1} parent=0 // pred_check
    _
  $region19: #{random_apply.1} parent=0 // pred_check_branch
    %37 = sbr.rel (0) target = $region21
  $region20: #{random_apply.1} parent=0 // pred_region
    _
  $region21: #{random_apply.1} parent=0 // pred_fallthru
    _

</llo_original>
